<compile_context>
chip_gen: v6e
topology: v6e:2x2x1
jax: 0.10.0
libtpu: 0.0.40
codegen_flags: <defaults>
</compile_context>

<pallas_src>
import functools

import jax
import jax.numpy as jnp
from jax.experimental import pallas as pl
from jax.experimental.pallas import tpu as pltpu


def _round_up(x, m):
    return (x + m - 1) // m * m


def policy_net_kernel(x_ref, w1_ref, b1_ref, w2_ref, b2_ref, out_ref):
    # In-kernel bf16 cast of the activation (cheaper than a pre-cast pass).
    x = x_ref[...].astype(jnp.bfloat16)
    # fc1: (TB, D_in) bf16 @ (D_in, H) bf16 -> (TB, H) f32 on the MXU.
    h = jnp.dot(x, w1_ref[...], preferred_element_type=jnp.float32)
    # Bias + ReLU in f32 on the VPU.
    h = jnp.maximum(h + b1_ref[...], 0.0)
    # fc2: (TB, H) bf16 @ (H, A) bf16 -> (TB, A) f32 accumulation.
    y = jnp.dot(h.astype(jnp.bfloat16), w2_ref[...],
                preferred_element_type=jnp.float32)
    out_ref[...] = (y + b2_ref[...]).astype(out_ref.dtype)


def prepare_params(w1, b1, w2, b2):
    """One-time parameter prep (call outside the rollout hot loop).

    Weights stored [in_features, out_features] (transposed vs. PyTorch's
    nn.Linear.weight) so the kernel computes x @ W + b directly. Matmul
    operands are cast to bf16 once; biases stay f32.
    """
    w1p = w1.astype(jnp.bfloat16)
    w2p = w2.astype(jnp.bfloat16)
    b1p = b1.reshape(1, -1).astype(jnp.float32)
    b2p = b2.reshape(1, -1).astype(jnp.float32)
    return w1p, b1p, w2p, b2p


@functools.partial(jax.jit, static_argnames=("block_b",))
def policy_net_forward(x, w1, b1, w2, b2, *, block_b=4096):
    """x: (B, D_in) f32; w1: (D_in, 64) bf16; b1: (1, 64) f32;
    w2: (64, A) bf16; b2: (1, A) f32.  Returns (B, A) f32 logits."""
    B, d_in = x.shape
    hidden = w1.shape[1]
    A = w2.shape[1]

    # Batch tile: sublane-aligned, capped at block_b; cdiv grid handles the
    # partial tail block (garbage tail rows never reach the (B, A) output).
    tb = min(block_b, _round_up(B, 8))
    grid = (pl.cdiv(B, tb),)

    flops = 2 * B * (d_in * hidden + hidden * A)
    bytes_accessed = (x.size * 4 + w1.size * 2 + w2.size * 2
                      + b1.size * 4 + b2.size * 4 + B * A * 4)

    return pl.pallas_call(
        policy_net_kernel,
        out_shape=jax.ShapeDtypeStruct((B, A), jnp.float32),
        grid=grid,
        in_specs=[
            pl.BlockSpec((tb, d_in), lambda i: (i, 0)),     # x: tiled on batch
            pl.BlockSpec((d_in, hidden), lambda i: (0, 0)), # w1: resident
            pl.BlockSpec((1, hidden), lambda i: (0, 0)),    # b1: resident
            pl.BlockSpec((hidden, A), lambda i: (0, 0)),    # w2: resident
            pl.BlockSpec((1, A), lambda i: (0, 0)),         # b2: resident
        ],
        out_specs=pl.BlockSpec((tb, A), lambda i: (i, 0)),  # unpadded (B, A)
        compiler_params=pltpu.CompilerParams(
            dimension_semantics=("parallel",)),
        cost_estimate=pl.CostEstimate(
            flops=flops, transcendentals=0, bytes_accessed=bytes_accessed),
    )(x, w1, b1, w2, b2)


def init_params(key, input_size, num_actions, hidden=64):
    # Deterministic init mimicking nn.Linear's uniform(-1/sqrt(fan_in), 1/sqrt(fan_in)).
    k1, k2, k3, k4 = jax.random.split(key, 4)
    bound1 = 1.0 / jnp.sqrt(jnp.float32(input_size))
    bound2 = 1.0 / jnp.sqrt(jnp.float32(hidden))
    w1 = jax.random.uniform(k1, (input_size, hidden), jnp.float32, -bound1, bound1)
    b1 = jax.random.uniform(k2, (1, hidden), jnp.float32, -bound1, bound1)
    w2 = jax.random.uniform(k3, (hidden, num_actions), jnp.float32, -bound2, bound2)
    b2 = jax.random.uniform(k4, (1, num_actions), jnp.float32, -bound2, bound2)
    return w1, b1, w2, b2


if __name__ == "__main__":
    key = jax.random.PRNGKey(0)
    batch = 2
    input_size = 8      # state dimension
    num_actions = 4

    k_params, k_x = jax.random.split(key)
    w1, b1, w2, b2 = init_params(k_params, input_size, num_actions)
    x = jax.random.normal(k_x, (batch, input_size), jnp.float32)

    # One-time parameter prep (hoisted out of the per-call hot path).
    w1p, b1p, w2p, b2p = prepare_params(w1, b1, w2, b2)

    # NOTE: at these toy shapes the call is pure dispatch overhead; in a real
    # rollout, batch many states/timesteps into a single policy_net_forward call.
    out = policy_net_forward(x, w1p, b1p, w2p, b2p)
    out = jax.block_until_ready(out)

    # Reference with bf16-matched matmul inputs (same math as the kernel).
    xb = x.astype(jnp.bfloat16).astype(jnp.float32)
    w1b = w1.astype(jnp.bfloat16).astype(jnp.float32)
    w2b = w2.astype(jnp.bfloat16).astype(jnp.float32)
    h_ref = jnp.maximum(xb @ w1b + b1, 0.0)
    ref = h_ref.astype(jnp.bfloat16).astype(jnp.float32) @ w2b + b2

    assert out.shape == (batch, num_actions)
    assert jnp.allclose(out, ref, atol=1e-2, rtol=1e-2), float(
        jnp.max(jnp.abs(out - ref)))

    # Loose sanity check against the full-precision f32 forward.
    ref_f32 = jnp.maximum(x @ w1 + b1, 0.0) @ w2 + b2
    assert jnp.allclose(out, ref_f32, atol=5e-2, rtol=5e-2), float(
        jnp.max(jnp.abs(out - ref_f32)))

    print("KERNEL_OK")
</pallas_src>

<mosaic_0001>
module attributes {stable_mosaic.version = 11 : i64} {
  func.func @policy_net_kernel(%arg0: i32, %arg1: memref<8x8xf32, #tpu.memory_space<vmem>>, %arg2: memref<8x64xbf16, #tpu.memory_space<vmem>>, %arg3: memref<1x64xf32, #tpu.memory_space<vmem>>, %arg4: memref<64x4xbf16, #tpu.memory_space<vmem>>, %arg5: memref<1x4xf32, #tpu.memory_space<vmem>>, %arg6: memref<8x4xf32, #tpu.memory_space<vmem>>) attributes {dimension_semantics = [#tpu.dimension_semantics<parallel>], iteration_bounds = array<i64: 1>, scalar_prefetch = 0 : i64, scratch_operands = 0 : i64, tpu.core_type = #tpu.core_type<tc>, window_params = [{transform_indices = @transform_0, window_bounds = array<i64: 8, 8>}, {pipeline_mode = #tpu.pipeline_mode<synchronous>, transform_indices = @transform_1, window_bounds = array<i64: 8, 64>}, {pipeline_mode = #tpu.pipeline_mode<synchronous>, transform_indices = @transform_2, window_bounds = array<i64: 1, 64>}, {pipeline_mode = #tpu.pipeline_mode<synchronous>, transform_indices = @transform_3, window_bounds = array<i64: 64, 4>}, {pipeline_mode = #tpu.pipeline_mode<synchronous>, transform_indices = @transform_4, window_bounds = array<i64: 1, 4>}, {transform_indices = @transform_5, window_bounds = array<i64: 8, 4>}]} {
    %c0 = arith.constant 0 : index
    %c0_0 = arith.constant 0 : index
    %0 = vector.load %arg1[%c0, %c0_0] : memref<8x8xf32, #tpu.memory_space<vmem>>, vector<8x8xf32>
    %1 = arith.truncf %0 : vector<8x8xf32> to vector<8x8xbf16>
    %c0_1 = arith.constant 0 : index
    %c0_2 = arith.constant 0 : index
    %2 = vector.load %arg2[%c0_1, %c0_2] : memref<8x64xbf16, #tpu.memory_space<vmem>>, vector<8x64xbf16>
    %cst = arith.constant dense<0.000000e+00> : vector<8x64xf32>
    %3 = tpu.matmul %1, %2, %cst {dimension_numbers = #tpu.dot_dimension_numbers<[1], [0], [0], [1], [0, 0, 1, 1], [], []>} : vector<8x8xbf16>, vector<8x64xbf16>, vector<8x64xf32> -> vector<8x64xf32>
    %c0_3 = arith.constant 0 : index
    %c0_4 = arith.constant 0 : index
    %4 = vector.load %arg3[%c0_3, %c0_4] : memref<1x64xf32, #tpu.memory_space<vmem>>, vector<1x64xf32>
    %5 = vector.broadcast %4 : vector<1x64xf32> to vector<8x64xf32>
    %6 = arith.addf %3, %5 : vector<8x64xf32>
    %cst_5 = arith.constant 0.000000e+00 : f32
    %7 = vector.broadcast %cst_5 : f32 to vector<8x64xf32>
    %8 = arith.maximumf %6, %7 : vector<8x64xf32>
    %9 = arith.truncf %8 : vector<8x64xf32> to vector<8x64xbf16>
    %c0_6 = arith.constant 0 : index
    %c0_7 = arith.constant 0 : index
    %10 = vector.load %arg4[%c0_6, %c0_7] : memref<64x4xbf16, #tpu.memory_space<vmem>>, vector<64x4xbf16>
    %cst_8 = arith.constant dense<0.000000e+00> : vector<8x4xf32>
    %11 = tpu.matmul %9, %10, %cst_8 {dimension_numbers = #tpu.dot_dimension_numbers<[1], [0], [0], [1], [0, 0, 1, 1], [], []>} : vector<8x64xbf16>, vector<64x4xbf16>, vector<8x4xf32> -> vector<8x4xf32>
    %c0_9 = arith.constant 0 : index
    %c0_10 = arith.constant 0 : index
    %12 = vector.load %arg5[%c0_9, %c0_10] : memref<1x4xf32, #tpu.memory_space<vmem>>, vector<1x4xf32>
    %13 = vector.broadcast %12 : vector<1x4xf32> to vector<8x4xf32>
    %14 = arith.addf %11, %13 : vector<8x4xf32>
    %c0_11 = arith.constant 0 : index
    %c0_12 = arith.constant 0 : index
    %15 = vector.load %arg6[%c0_11, %c0_12] : memref<8x4xf32, #tpu.memory_space<vmem>>, vector<8x4xf32>
    tpu.vector_store %arg6[%c0_11, %c0_12], %14 {strides = array<i32>} : memref<8x4xf32, #tpu.memory_space<vmem>>, vector<8x4xf32>,
    return
  }
  func.func @transform_0(%arg0: i32) -> (i32, i32) {
    %c0_i32 = arith.constant 0 : i32
    %c0_i32_0 = arith.constant 0 : i32
    return %arg0, %c0_i32 : i32, i32
  }
  func.func @transform_1(%arg0: i32) -> (i32, i32) {
    %c0_i32 = arith.constant 0 : i32
    %c0_i32_0 = arith.constant 0 : i32
    %c0_i32_1 = arith.constant 0 : i32
    return %c0_i32, %c0_i32_0 : i32, i32
  }
  func.func @transform_2(%arg0: i32) -> (i32, i32) {
    %c0_i32 = arith.constant 0 : i32
    %c0_i32_0 = arith.constant 0 : i32
    %c0_i32_1 = arith.constant 0 : i32
    return %c0_i32, %c0_i32_0 : i32, i32
  }
  func.func @transform_3(%arg0: i32) -> (i32, i32) {
    %c0_i32 = arith.constant 0 : i32
    %c0_i32_0 = arith.constant 0 : i32
    %c0_i32_1 = arith.constant 0 : i32
    return %c0_i32, %c0_i32_0 : i32, i32
  }
  func.func @transform_4(%arg0: i32) -> (i32, i32) {
    %c0_i32 = arith.constant 0 : i32
    %c0_i32_0 = arith.constant 0 : i32
    %c0_i32_1 = arith.constant 0 : i32
    return %c0_i32, %c0_i32_0 : i32, i32
  }
  func.func @transform_5(%arg0: i32) -> (i32, i32) {
    %c0_i32 = arith.constant 0 : i32
    %c0_i32_0 = arith.constant 0 : i32
    return %arg0, %c0_i32 : i32, i32
  }
}

</mosaic_0001>

<llo_original>
// kernel: policy_net_forward.1
$region0: #{policy_net_forward.1}
  #allocation0 [shape = 'u32[]', space=smem, size = 0x4, offset = 0x4, fixed_abs, tag = 'smem constant byte address 0x4 - core index']
  #allocation1 [shape = 'u32[144,128]{1,0:T(1,128)}', space=vmem, size = 0x12000, scoped, tag = 'internal scratch']
  %s0 = inlined_call_operand.vmem [shape: f32[2,8], index: 0, kind: input, shape index: {}]
  %s1 = inlined_call_operand.vmem [shape: bf16[8,64], index: 1, kind: input, shape index: {}]
  %s2 = inlined_call_operand.vmem [shape: f32[1,64], index: 2, kind: input, shape index: {}]
  %s3 = inlined_call_operand.vmem [shape: bf16[64,4], index: 3, kind: input, shape index: {}]
  %s4 = inlined_call_operand.vmem [shape: f32[1,4], index: 4, kind: input, shape index: {}]
  %s5 = inlined_call_operand.hbm [shape: f32[2,4], index: 5, kind: output, shape index: {}]
  %s6 = sld [smem:[#allocation0]]
  $region30: #{policy_net_forward.1} parent=0
    _
  %s8 = ssub.s32 1, %s6
  %s9 = scalar_select 0, %s8, %s6
  $region1: #{policy_net_forward.1} parent=0
    #allocation2 [shape = 'u8[4096]{0}', space=vmem, size = 0x1000, scoped, tag = 'output window, operand 0, single buffered']
    #allocation3 [shape = 's32[1]{0}', space=sflag, size = 0x4, scoped, tag = 'scoped memory for policy_net_forward.1']
    %10 = vsyncpa [#allocation3], 0
    // Predicated region
    $region2: #{policy_net_forward.1} parent=1 // pred_check
      _
    $region3: #{policy_net_forward.1} parent=1 // pred_check_branch
      %12 = sbr.rel (0) target = $region5
    $region4: #{policy_net_forward.1} parent=1 // pred_region
      _
    $region5: #{policy_net_forward.1} parent=1 // pred_fallthru
      _
    // Predicated region
    $region6: #{policy_net_forward.1} parent=1 // pred_check
      _
    $region7: #{policy_net_forward.1} parent=1 // pred_check_branch
      %14 = sbr.rel (0) target = $region9
    $region8: #{policy_net_forward.1} parent=1 // pred_region
      _
    $region9: #{policy_net_forward.1} parent=1 // pred_fallthru
      _
    // Predicated region
    $region10: #{policy_net_forward.1} parent=1 // pred_check
      _
    $region11: #{policy_net_forward.1} parent=1 // pred_check_branch
      %16 = sbr.rel (0) target = $region13
    $region12: #{policy_net_forward.1} parent=1 // pred_region
      _
    $region13: #{policy_net_forward.1} parent=1 // pred_fallthru
      _
    // Predicated region
    $region14: #{policy_net_forward.1} parent=1 // pred_check
      _
    $region15: #{policy_net_forward.1} parent=1 // pred_check_branch
      %18 = sbr.rel (0) target = $region17
    $region16: #{policy_net_forward.1} parent=1 // pred_region
      _
    $region17: #{policy_net_forward.1} parent=1 // pred_fallthru
      _
    // Predicated region
    $region18: #{policy_net_forward.1} parent=1 // pred_check
      _
    $region19: #{policy_net_forward.1} parent=1 // pred_check_branch
      %20 = sbr.rel (0) target = $region21
    $region20: #{policy_net_forward.1} parent=1 // pred_region
      _
    $region21: #{policy_net_forward.1} parent=1 // pred_fallthru
      _
    %v22 = vld [vmem:[%s0] sm:$0xff]
    %v23 = vpack.c.bf16 %v22, %v22
    %v24 = vld [vmem:[%s1] sm:$0xf]
    %v25 = vld [vmem:[%s2] sm:$0x1]
    %v27 = vlaneseq
    %v28 = vshrl.u32 %v27, 7
    %v29 = vsub.s32 0, %v28
    %v30 = vrot.slane %v25, %v29
    %vm32 = vcmask 64512
    %v34 = vsel %vm32, %v23, 0
    %vm36 = vcmask 1043456
    %v38 = vsel %vm36, %v24, 0
    %40 = vmatprep.subr.bf16.mxu0 0
    %41 = vmatpush1.bf16.msra.mxu0 0
    %42 = vmatprep.subr.bf16.mxu0 0
    %43 = vmatpush1.bf16.msra.mxu0 0
    %44 = vmatprep.subr.bf16.mxu0 0
    %45 = vmatpush1.bf16.msra.mxu0 0
    %46 = vmatprep.subr.bf16.mxu0 0
    %47 = vmatpush1.bf16.msra.mxu0 0
    %48 = vmatprep.subr.bf16.mxu0 0
    %49 = vmatpush1.bf16.msra.mxu0 0
    %50 = vmatprep.subr.bf16.mxu0 0
    %51 = vmatpush1.bf16.msra.mxu0 0
    %52 = vmatprep.subr.bf16.mxu0 0
    %53 = vmatpush1.bf16.msra.mxu0 0
    %54 = vmatprep.subr.bf16.mxu0 0
    %55 = vmatpush1.bf16.msra.mxu0 %v38
    %56 = vmatprep.subr.bf16.mxu0 0
    %57 = vmatpush2.bf16.msra.mxu0 0
    %58 = vmatprep.subr.bf16.mxu0 0
    %59 = vmatpush2.bf16.msra.mxu0 0
    %60 = vmatprep.subr.bf16.mxu0 0
    %61 = vmatpush2.bf16.msra.mxu0 0
    %62 = vmatprep.subr.bf16.mxu0 0
    %63 = vmatpush2.bf16.msra.mxu0 0
    %64 = vmatprep.subr.bf16.mxu0 0
    %65 = vmatpush2.bf16.msra.mxu0 0
    %66 = vmatprep.subr.bf16.mxu0 0
    %67 = vmatpush2.bf16.msra.mxu0 0
    %68 = vmatprep.subr.bf16.mxu0 0
    %69 = vmatpush2.bf16.msra.mxu0 0
    %70 = vmatprep.subr.bf16.mxu0 0
    %71 = vmatpush2.bf16.msra.mxu0 0
    %72 = vmatprep.mubr.bf16.mxu0 0
    %73 = vmatmul.mubr.bf16.gmra.mxu0 %v34
    %v74 = vpop.f32.mrf.mxu0
    %v75 = vadd.f32 %v30, %v74
    %v76 = vpop.f32.mrf.mxu0
    %v77 = vpop.f32.mrf.mxu0
    %v78 = vpop.f32.mrf.mxu0
    %79 = vdwg.mxu0
    %v80 = vmax.f32 %v75, 0.0
    %v81 = vpack.c.bf16 %v80, %v80
    %v82 = vld [vmem:[%s3] sm:$0xf]
    %v83 = vld [vmem:[%s3 + $0x4] sm:$0xf]
    %v84 = vld [vmem:[%s3 + $0x8] sm:$0xf]
    %v85 = vld [vmem:[%s3 + $0xc] sm:$0xf]
    %v86 = vld [vmem:[%s3 + $0x10] sm:$0xf]
    %v87 = vld [vmem:[%s3 + $0x14] sm:$0xf]
    %v88 = vld [vmem:[%s3 + $0x18] sm:$0xf]
    %v89 = vld [vmem:[%s3 + $0x1c] sm:$0xf]
    %v90 = vld [vmem:[%s4] sm:$0x1]
    %v92 = vlaneseq
    %v93 = vshrl.u32 %v92, 7
    %v94 = vsub.s32 0, %v93
    %v95 = vrot.slane %v90, %v94
    %v105 = vunpack.c.l.b16 %v82
    %v106 = vunpack.c.l.b16 %v83
    %v107 = vunpack.c.l.b16 %v84
    %v108 = vunpack.c.l.b16 %v85
    %v109 = vunpack.c.l.b16 %v86
    %v110 = vunpack.c.l.b16 %v87
    %v111 = vunpack.c.l.b16 %v88
    %v112 = vunpack.c.l.b16 %v89
    %v113 = vpack.c.b16 %v106, %v105
    %v114 = vpack.c.b16 %v108, %v107
    %v115 = vpack.c.b16 %v110, %v109
    %v116 = vpack.c.b16 %v112, %v111
    %vm121 = vcmask 523264
    %v123 = vsel %vm121, %v81, 0
    %125 = vmatprep.subr.bf16.mxu0 0
    %126 = vmatpush1.bf16.msra.mxu0 0
    %127 = vmatprep.subr.bf16.mxu0 0
    %128 = vmatpush1.bf16.msra.mxu0 0
    %129 = vmatprep.subr.bf16.mxu0 0
    %130 = vmatpush1.bf16.msra.mxu0 0
    %131 = vmatprep.subr.bf16.mxu0 0
    %132 = vmatpush1.bf16.msra.mxu0 0
    %133 = vmatprep.subr.bf16.mxu0 0
    %134 = vmatpush1.bf16.msra.mxu0 %v116
    %135 = vmatprep.subr.bf16.mxu0 0
    %136 = vmatpush1.bf16.msra.mxu0 %v115
    %137 = vmatprep.subr.bf16.mxu0 0
    %138 = vmatpush1.bf16.msra.mxu0 %v114
    %139 = vmatprep.subr.bf16.mxu0 0
    %140 = vmatpush1.bf16.msra.mxu0 %v113
    %141 = vmatprep.subr.bf16.mxu0 0
    %142 = vmatpush2.bf16.msra.mxu0 0
    %143 = vmatprep.subr.bf16.mxu0 0
    %144 = vmatpush2.bf16.msra.mxu0 0
    %145 = vmatprep.subr.bf16.mxu0 0
    %146 = vmatpush2.bf16.msra.mxu0 0
    %147 = vmatprep.subr.bf16.mxu0 0
    %148 = vmatpush2.bf16.msra.mxu0 0
    %149 = vmatprep.subr.bf16.mxu0 0
    %150 = vmatpush2.bf16.msra.mxu0 0
    %151 = vmatprep.subr.bf16.mxu0 0
    %152 = vmatpush2.bf16.msra.mxu0 0
    %153 = vmatprep.subr.bf16.mxu0 0
    %154 = vmatpush2.bf16.msra.mxu0 0
    %155 = vmatprep.subr.bf16.mxu0 0
    %156 = vmatpush2.bf16.msra.mxu0 0
    %157 = vmatprep.mubr.bf16.mxu0 0
    %158 = vmatmul.mubr.bf16.gmra.mxu0 %v123
    %v159 = vpop.f32.mrf.mxu0
    %v160 = vadd.f32 %v95, %v159
    %v161 = vpop.f32.mrf.mxu0
    %v162 = vpop.f32.mrf.mxu0
    %v163 = vpop.f32.mrf.mxu0
    %164 = vdwg.mxu0
    %vm165 = vcmask 31744
    %166 = vst.msk [vmem:[#allocation2] sm:$0xff] %vm165, %v160
    // Predicated region
    $region22: #{policy_net_forward.1} parent=1 // pred_check
      _
    $region23: #{policy_net_forward.1} parent=1 // pred_check_branch
      %168 = sbr.rel (0) target = $region25
    $region24: #{policy_net_forward.1} parent=1 // pred_region
      %s170 = ssub.s32 128, 32
      %171 = vsyncadd [#allocation3], %s170
      %s172 = sshll.u32 [#allocation2], 4
      %s173 = int_to_ptr.vmem [resolvable:$true] %s172
      %178 = dma.vmem_to_hbm [thread:$0]  %s173, 32, %s5, [#allocation3], 32, 32, 2
    $region25: #{policy_net_forward.1} parent=1 // pred_fallthru
      _
    // Predicated region
    $region26: #{policy_net_forward.1} parent=1 // pred_check
      _
    $region27: #{policy_net_forward.1} parent=1 // pred_check_branch
      %180 = sbr.rel (0) target = $region29
    $region28: #{policy_net_forward.1} parent=1 // pred_region
      %181 = dma.done [#allocation3], 128
    $region29: #{policy_net_forward.1} parent=1 // pred_fallthru
      _
    %182 = vsyncpa [#allocation3], 1

</llo_original>
